<compile_context>
chip_gen: v7x
topology: tpu7x:2x2x1
jax: 0.10.0
libtpu: 0.0.40
codegen_flags: <defaults>
</compile_context>

<pallas_src>
import jax
import jax.numpy as jnp
from jax.experimental import pallas as pl
from jax.experimental.pallas import tpu as pltpu


# --------------------------------------------------------------------------- #
# Kernel
# --------------------------------------------------------------------------- #
def _stress_predictor_kernel(w1_ref, w2_ref, x_ref, o_ref):
    # w1_ref: [10, 3]   (PyTorch hidden.weight, used as-is)
    # w2_ref: [3, 10]   (PyTorch output.weight, used as-is)
    # x_ref:  [3, TB]   strain tile, batch on the 128-lane axis (lane-dense)
    # o_ref:  [3, TB]   stress tile, batch on the 128-lane axis
    h = jnp.dot(w1_ref[...], x_ref[...], preferred_element_type=jnp.float32)
    h = jnp.maximum(h, 0.0)  # ReLU on the VPU
    y = jnp.dot(w2_ref[...], h, preferred_element_type=jnp.float32)
    o_ref[...] = y.astype(o_ref.dtype)


# --------------------------------------------------------------------------- #
# References (pure fused-XLA paths, also used as the tiny-batch fallback)
# --------------------------------------------------------------------------- #
def _reference_forward_fm(strain_fm, w_hidden, w_output):
    # strain_fm: [3, B]
    h = jnp.maximum(w_hidden @ strain_fm, 0.0)
    return w_output @ h


def _reference_forward(strain, w_hidden, w_output):
    # strain: [B, 3]  (PyTorch layout)
    h = jnp.maximum(strain @ w_hidden.T, 0.0)
    return h @ w_output.T


# --------------------------------------------------------------------------- #
# Tile selection
# --------------------------------------------------------------------------- #
_DEFAULT_TB = 32 * 1024   # ~6.5 MiB double-buffered padded io: safe on v5e's
                          # 16 MiB scoped-VMEM default, v6e 32 MiB, v7x 64 MiB.
_MAX_TB = 64 * 1024       # hard cap; combined with vmem_limit_bytes below.


def _choose_tile(batch, tb):
    tb = int(tb)
    tb = max(128, (tb // 128) * 128)        # lane-aligned
    tb = min(tb, _MAX_TB)
    # Ensure >= 2 grid steps whenever possible so the "parallel" batch axis can
    # shard across both TensorCores on v7x (harmless on single-TC v5e/v6e).
    if batch > 128:
        half = pl.cdiv(pl.cdiv(batch, 2), 128) * 128
        tb = min(tb, half)
    return tb


# --------------------------------------------------------------------------- #
# Primary (feature-major) entry point: strain [3, B] -> stress [3, B]
# --------------------------------------------------------------------------- #
def stress_predictor_forward_fm(strain_fm, w_hidden, w_output, *,
                                tb=_DEFAULT_TB, min_kernel_batch=2048):
    """Feature-major forward pass of StressPredictor.

    strain_fm: [3, B]  float32  (batch on the last / lane axis)
    w_hidden:  [10, 3] float32  (nn.Linear(3, 10, bias=False).weight layout)
    w_output:  [3, 10] float32  (nn.Linear(10, 3, bias=False).weight layout)
    returns:   [3, B]  float32
    """
    assert strain_fm.shape[0] == 3
    B = strain_fm.shape[1]

    # Tiny-batch fast path: a kernel launch dwarfs ~120 FLOP/sample.
    if B < min_kernel_batch or B < 128:
        return _reference_forward_fm(strain_fm, w_hidden, w_output)

    tb = _choose_tile(B, tb)
    n_tiles = pl.cdiv(B, tb)          # partial last block handled by Pallas
                                      # (masked writeback; no jnp.pad copy).

    return pl.pallas_call(
        _stress_predictor_kernel,
        out_shape=jax.ShapeDtypeStruct((3, B), jnp.float32),
        grid=(n_tiles,),
        in_specs=[
            pl.BlockSpec((10, 3), lambda i: (0, 0)),   # W1: VMEM-resident
            pl.BlockSpec((3, 10), lambda i: (0, 0)),   # W2: VMEM-resident
            pl.BlockSpec((3, tb), lambda i: (0, i)),   # strain tile (lane-dense)
        ],
        out_specs=pl.BlockSpec((3, tb), lambda i: (0, i)),
        compiler_params=pltpu.CompilerParams(
            dimension_semantics=("parallel",),
            # Headroom for tb up to _MAX_TB on every generation (v5e default
            # scoped VMEM is only 16 MiB; physical is far larger everywhere).
            vmem_limit_bytes=32 << 20,
        ),
    )(w_hidden, w_output, strain_fm)


# --------------------------------------------------------------------------- #
# PyTorch-layout compatibility wrapper: strain [B, 3] -> stress [B, 3]
# --------------------------------------------------------------------------- #
def stress_predictor_forward(strain, w_hidden, w_output, *,
                             tb=_DEFAULT_TB, min_kernel_batch=8192):
    """Drop-in [B, 3] interface.

    NOTE: the two transposes here are extra HBM->HBM passes (~3x the kernel's
    own traffic).  In a fused pipeline keep activations feature-major and call
    stress_predictor_forward_fm directly.
    """
    B = strain.shape[0]
    if B < min_kernel_batch:
        return _reference_forward(strain, w_hidden, w_output)
    out_fm = stress_predictor_forward_fm(strain.T, w_hidden, w_output,
                                         tb=tb, min_kernel_batch=0)
    return out_fm.T


# --------------------------------------------------------------------------- #
# Self-test
# --------------------------------------------------------------------------- #
if __name__ == "__main__":
    key = jax.random.PRNGKey(0)
    k_x, k_x2, k_xs, k_w1, k_w2 = jax.random.split(key, 5)

    hidden_neurons = 10
    # Same shapes as the PyTorch module:
    #   hidden: nn.Linear(3, 10, bias=False) -> weight [10, 3]
    #   output: nn.Linear(10, 3, bias=False) -> weight [3, 10]
    w_hidden = jax.random.uniform(k_w1, (hidden_neurons, 3),
                                  dtype=jnp.float32, minval=-0.5, maxval=0.5)
    w_output = jax.random.uniform(k_w2, (3, hidden_neurons),
                                  dtype=jnp.float32, minval=-0.5, maxval=0.5)

    # 1) Feature-major kernel path.  B=512 -> tile auto-splits to tb=256,
    #    2 grid steps (exercises pipelining + v7x 2-TC sharding logic).
    B = 512
    strain_fm = jax.random.normal(k_x, (3, B), dtype=jnp.float32)
    stress_fm = stress_predictor_forward_fm(strain_fm, w_hidden, w_output,
                                            min_kernel_batch=0)
    stress_fm = jax.block_until_ready(stress_fm)
    ref_fm = _reference_forward_fm(strain_fm, w_hidden, w_output)
    assert stress_fm.shape == (3, B)
    assert jnp.allclose(stress_fm, ref_fm, atol=1e-5, rtol=1e-5)

    # 2) Ragged batch (not a multiple of 128): exercises the masked partial
    #    last block -- no jnp.pad anywhere.
    B2 = 300
    strain_fm2 = jax.random.normal(k_x2, (3, B2), dtype=jnp.float32)
    stress_fm2 = jax.block_until_ready(
        stress_predictor_forward_fm(strain_fm2, w_hidden, w_output,
                                    min_kernel_batch=0))
    ref_fm2 = _reference_forward_fm(strain_fm2, w_hidden, w_output)
    assert stress_fm2.shape == (3, B2)
    assert jnp.allclose(stress_fm2, ref_fm2, atol=1e-5, rtol=1e-5)

    # 3) PyTorch-layout compat wrapper, tiny batch -> fused-XLA fallback path.
    strain_small = jax.random.normal(k_xs, (8, 3), dtype=jnp.float32)
    stress_small = jax.block_until_ready(
        stress_predictor_forward(strain_small, w_hidden, w_output))
    ref_small = _reference_forward(strain_small, w_hidden, w_output)
    assert stress_small.shape == (8, 3)
    assert jnp.allclose(stress_small, ref_small, atol=1e-5, rtol=1e-5)

    print("KERNEL_OK")
</pallas_src>

<mosaic_0001>
module attributes {stable_mosaic.version = 11 : i64} {
  func.func @_stress_predictor_kernel(%arg0: i32, %arg1: memref<10x3xf32, #tpu.memory_space<vmem>>, %arg2: memref<3x10xf32, #tpu.memory_space<vmem>>, %arg3: memref<3x256xf32, #tpu.memory_space<vmem>>, %arg4: memref<3x256xf32, #tpu.memory_space<vmem>>) attributes {dimension_semantics = [#tpu.dimension_semantics<parallel>], iteration_bounds = array<i64: 2>, scalar_prefetch = 0 : i64, scratch_operands = 0 : i64, tpu.core_type = #tpu.core_type<tc>, window_params = [{pipeline_mode = #tpu.pipeline_mode<synchronous>, transform_indices = @transform_0, window_bounds = array<i64: 10, 3>}, {pipeline_mode = #tpu.pipeline_mode<synchronous>, transform_indices = @transform_1, window_bounds = array<i64: 3, 10>}, {transform_indices = @transform_2, window_bounds = array<i64: 3, 256>}, {transform_indices = @transform_3, window_bounds = array<i64: 3, 256>}]} {
    %c0 = arith.constant 0 : index
    %c0_0 = arith.constant 0 : index
    %0 = vector.load %arg1[%c0, %c0_0] : memref<10x3xf32, #tpu.memory_space<vmem>>, vector<10x3xf32>
    %c0_1 = arith.constant 0 : index
    %c0_2 = arith.constant 0 : index
    %1 = vector.load %arg3[%c0_1, %c0_2] : memref<3x256xf32, #tpu.memory_space<vmem>>, vector<3x256xf32>
    %cst = arith.constant dense<0.000000e+00> : vector<10x256xf32>
    %2 = tpu.matmul %0, %1, %cst {dimension_numbers = #tpu.dot_dimension_numbers<[1], [0], [0], [1], [0, 0, 1, 1], [], []>} : vector<10x3xf32>, vector<3x256xf32>, vector<10x256xf32> -> vector<10x256xf32>
    %cst_3 = arith.constant 0.000000e+00 : f32
    %3 = vector.broadcast %cst_3 : f32 to vector<10x256xf32>
    %4 = arith.maximumf %2, %3 : vector<10x256xf32>
    %c0_4 = arith.constant 0 : index
    %c0_5 = arith.constant 0 : index
    %5 = vector.load %arg2[%c0_4, %c0_5] : memref<3x10xf32, #tpu.memory_space<vmem>>, vector<3x10xf32>
    %cst_6 = arith.constant dense<0.000000e+00> : vector<3x256xf32>
    %6 = tpu.matmul %5, %4, %cst_6 {dimension_numbers = #tpu.dot_dimension_numbers<[1], [0], [0], [1], [0, 0, 1, 1], [], []>} : vector<3x10xf32>, vector<10x256xf32>, vector<3x256xf32> -> vector<3x256xf32>
    %c0_7 = arith.constant 0 : index
    %c0_8 = arith.constant 0 : index
    %7 = vector.load %arg4[%c0_7, %c0_8] : memref<3x256xf32, #tpu.memory_space<vmem>>, vector<3x256xf32>
    tpu.vector_store %arg4[%c0_7, %c0_8], %6 {strides = array<i32>} : memref<3x256xf32, #tpu.memory_space<vmem>>, vector<3x256xf32>,
    return
  }
  func.func @transform_0(%arg0: i32) -> (i32, i32) {
    %c0_i32 = arith.constant 0 : i32
    %c0_i32_0 = arith.constant 0 : i32
    %c0_i32_1 = arith.constant 0 : i32
    return %c0_i32, %c0_i32_0 : i32, i32
  }
  func.func @transform_1(%arg0: i32) -> (i32, i32) {
    %c0_i32 = arith.constant 0 : i32
    %c0_i32_0 = arith.constant 0 : i32
    %c0_i32_1 = arith.constant 0 : i32
    return %c0_i32, %c0_i32_0 : i32, i32
  }
  func.func @transform_2(%arg0: i32) -> (i32, i32) {
    %c0_i32 = arith.constant 0 : i32
    %c0_i32_0 = arith.constant 0 : i32
    return %c0_i32, %arg0 : i32, i32
  }
  func.func @transform_3(%arg0: i32) -> (i32, i32) {
    %c0_i32 = arith.constant 0 : i32
    %c0_i32_0 = arith.constant 0 : i32
    return %c0_i32, %arg0 : i32, i32
  }
}

</mosaic_0001>

<llo_original>
// kernel: tpu_custom_call.1
$region0: #{tpu_custom_call.1}
  #allocation0 [shape = 'u32[]', space=smem, size = 0x4, offset = 0x4, fixed_abs, tag = 'smem constant byte address 0x4 - core index']
  #allocation1 [shape = 'u32[144,128]{1,0:T(1,128)}', space=vmem, size = 0x12000, scoped, tag = 'internal scratch']
  %s0 = inlined_call_operand.vmem [shape: f32[10,3], index: 0, kind: input, shape index: {}]
  %s1 = inlined_call_operand.vmem [shape: f32[3,10], index: 1, kind: input, shape index: {}]
  %s2 = inlined_call_operand.vmem [shape: f32[3,512], index: 2, kind: input, shape index: {}]
  %s3 = inlined_call_operand.hbm [shape: f32[3,512], index: 3, kind: output, shape index: {}]
  %s4 = sld [smem:[#allocation0]]
  $region45: #{tpu_custom_call.1} parent=0
    _
  %s6 = ssub.s32 1, %s4
  %s7 = scalar_select 0, %s6, %s4
  $region1: #{tpu_custom_call.1} parent=0
    #allocation2 [shape = 'u8[8192]{0}', space=vmem, size = 0x2000, scoped, tag = 'output window, operand 0']
    #allocation3 [shape = 's32[2]{0}', space=sflag, size = 0x8, scoped, tag = 'scoped memory for tpu_custom_call.1']
    %8 = vsyncpa [#allocation3], 0
    %s9 = scalar_lea.sflag [#allocation3], 1
    %10 = vsyncpa %s9, 0
    loop: start=0, step=1, limit=4
    $region2: #{tpu_custom_call.1} parent=1 // loop_pre_header
      _
    $region3: #{tpu_custom_call.1} parent=1 // loop_header
      %s12 = sphi 0, %s16
      %p13 = scmp.ge.s32.totalorder %s12, 4
      %s20 = sphi 0, %s20
      %s22 = sphi 0, %s20
      %s23 = sphi 0, %s22
      %s37 = sphi 0, %s23
      %s41 = sphi 0, %s41
      %s43 = sphi 0, %s41
      %s44 = sphi 0, %s43
      %s58 = sphi 0, %s44
      %s64 = sphi 0, %s66
      %s67 = sphi 0, %s64
      %s68 = sphi 0, %s67
      %s84 = sphi 0, %s68
      %s90 = sphi 0, %s92
      %s93 = sphi 0, %s90
      %s94 = sphi 0, %s93
      %s110 = sphi 0, %s94
    $region4: #{tpu_custom_call.1} parent=1 // loop_header_branch
      %15 = sbr.rel (%p13) target = $region8
    $region5: #{tpu_custom_call.1} parent=1 // loop_body
      %s17 = ssub.s32 %s12, 1
      %s18 = ssub.s32 %s12, 2
      %s19 = sadd.s32 %s12, 1
      %s21 = sadd.s32 %s20, 1
      %p24 = scmp.eq.s32.totalorder %s12, 1
      %p25 = scmp.ne.s32.totalorder %s20, %s22
      %p26 = scmp.eq.s32.totalorder %s12, 0
      %p27 = por %p25, %p26
      %p28 = scmp.ne.s32.totalorder %s20, %s22
      %p29 = scmp.eq.s32.totalorder %s17, 1
      %p30 = por %p28, %p29
      %p31 = scmp.ne.s32.totalorder %s22, %s23
      %p32 = scmp.eq.s32.totalorder %s17, 0
      %p33 = por %p31, %p32
      %p34 = scmp.ne.s32.totalorder %s22, %s23
      %p35 = scmp.eq.s32.totalorder %s18, 1
      %p36 = por %p34, %p35
      %p38 = scmp.ne.s32.totalorder %s23, %s37
      %p39 = scmp.eq.s32.totalorder %s18, 0
      %p40 = por %p38, %p39
      %s42 = sadd.s32 %s41, 1
      %p45 = scmp.eq.s32.totalorder %s12, 1
      %p46 = scmp.ne.s32.totalorder %s41, %s43
      %p47 = scmp.eq.s32.totalorder %s12, 0
      %p48 = por %p46, %p47
      %p49 = scmp.ne.s32.totalorder %s41, %s43
      %p50 = scmp.eq.s32.totalorder %s17, 1
      %p51 = por %p49, %p50
      %p52 = scmp.ne.s32.totalorder %s43, %s44
      %p53 = scmp.eq.s32.totalorder %s17, 0
      %p54 = por %p52, %p53
      %p55 = scmp.ne.s32.totalorder %s43, %s44
      %p56 = scmp.eq.s32.totalorder %s18, 1
      %p57 = por %p55, %p56
      %p59 = scmp.ne.s32.totalorder %s44, %s58
      %p60 = scmp.eq.s32.totalorder %s18, 0
      %p61 = por %p59, %p60
      %s62 = ssub.s32 %s12, %s19
      %p63 = scmp.eq.s32.totalorder %s62, 0
      %s65 = sadd.s32 %s64, 1
      %s66 = scalar_select %p63, %s64, %s65
      %p69 = pneg %p63
      %p70 = scmp.eq.s32.totalorder %s12, 1
      %p71 = por %p69, %p70
      %p72 = scmp.ne.s32.totalorder %s64, %s67
      %p73 = scmp.eq.s32.totalorder %s12, 0
      %p74 = por %p72, %p73
      %p75 = scmp.ne.s32.totalorder %s64, %s67
      %p76 = scmp.eq.s32.totalorder %s17, 1
      %p77 = por %p75, %p76
      %p78 = scmp.ne.s32.totalorder %s67, %s68
      %p79 = scmp.eq.s32.totalorder %s17, 0
      %p80 = por %p78, %p79
      %p81 = scmp.ne.s32.totalorder %s67, %s68
      %p82 = scmp.eq.s32.totalorder %s18, 1
      %p83 = por %p81, %p82
      %p85 = scmp.ne.s32.totalorder %s68, %s84
      %p86 = scmp.eq.s32.totalorder %s18, 0
      %p87 = por %p85, %p86
      %s88 = ssub.s32 %s12, %s19
      %p89 = scmp.eq.s32.totalorder %s88, 0
      %s91 = sadd.s32 %s90, 1
      %s92 = scalar_select %p89, %s90, %s91
      %p95 = pneg %p89
      %p96 = scmp.eq.s32.totalorder %s12, 1
      %p97 = por %p95, %p96
      %p98 = scmp.ne.s32.totalorder %s90, %s93
      %p99 = scmp.eq.s32.totalorder %s12, 0
      %p100 = por %p98, %p99
      %p101 = scmp.ne.s32.totalorder %s90, %s93
      %p102 = scmp.eq.s32.totalorder %s17, 1
      %p103 = por %p101, %p102
      %p104 = scmp.ne.s32.totalorder %s93, %s94
      %p105 = scmp.eq.s32.totalorder %s17, 0
      %p106 = por %p104, %p105
      %p107 = scmp.ne.s32.totalorder %s93, %s94
      %p108 = scmp.eq.s32.totalorder %s18, 1
      %p109 = por %p107, %p108
      %p111 = scmp.ne.s32.totalorder %s94, %s110
      %p112 = scmp.eq.s32.totalorder %s18, 0
      %p113 = por %p111, %p112
      %p114 = scmp.le.s32.totalorder 1, %s12
      %p115 = scmp.lt.s32.totalorder %s12, 3
      %p116 = pnand %p114, %p115
      %p117 = pneg %p116
      // Predicated region
      $region9: #{tpu_custom_call.1} parent=5 // pred_check
        _
      $region10: #{tpu_custom_call.1} parent=5 // pred_check_branch
        %119 = sbr.rel (%p116) target = $region12
      $region11: #{tpu_custom_call.1} parent=5 // pred_region
        %s120 = ssub.s32 %s12, 1
        // Predicated region
        $region13: #{tpu_custom_call.1} parent=11 // pred_check
          %p121 = pneg %p33
        $region14: #{tpu_custom_call.1} parent=11 // pred_check_branch
          %123 = sbr.rel (%p121) target = $region16
        $region15: #{tpu_custom_call.1} parent=11 // pred_region
          _
        $region16: #{tpu_custom_call.1} parent=11 // pred_fallthru
          _
        // Predicated region
        $region17: #{tpu_custom_call.1} parent=11 // pred_check
          %p124 = pneg %p54
        $region18: #{tpu_custom_call.1} parent=11 // pred_check_branch
          %126 = sbr.rel (%p124) target = $region20
        $region19: #{tpu_custom_call.1} parent=11 // pred_region
          _
        $region20: #{tpu_custom_call.1} parent=11 // pred_fallthru
          _
      $region12: #{tpu_custom_call.1} parent=5 // pred_fallthru
        _
      %p127 = scmp.lt.s32.totalorder %s12, 2
      // Predicated region
      $region21: #{tpu_custom_call.1} parent=5 // pred_check
        %p128 = pneg %p127
      $region22: #{tpu_custom_call.1} parent=5 // pred_check_branch
        %130 = sbr.rel (%p128) target = $region24
      $region23: #{tpu_custom_call.1} parent=5 // pred_region
        // Predicated region
        $region25: #{tpu_custom_call.1} parent=23 // pred_check
          %p131 = pneg %p74
        $region26: #{tpu_custom_call.1} parent=23 // pred_check_branch
          %133 = sbr.rel (%p131) target = $region28
        $region27: #{tpu_custom_call.1} parent=23 // pred_region
          %s134 = smul.u32 2, %s12
          %p135 = scmp.lt.s32.totalorder %s134, 3
          %s136 = scalar_select %p135, %s134, 3
          %s137 = smul.addr %s136, 4
          %s138 = scalar_lea.vmem %s2, %s137
          %s139 = smul.u32 2, %s12
        $region28: #{tpu_custom_call.1} parent=23 // pred_fallthru
          _
      $region24: #{tpu_custom_call.1} parent=5 // pred_fallthru
        _
      %p140 = scmp.le.s32.totalorder 1, %s12
      %p141 = scmp.lt.s32.totalorder %s12, 3
      %p142 = pnand %p140, %p141
      %p143 = pneg %p142
      // Predicated region
      $region29: #{tpu_custom_call.1} parent=5 // pred_check
        _
      $region30: #{tpu_custom_call.1} parent=5 // pred_check_branch
        %145 = sbr.rel (%p142) target = $region32
      $region31: #{tpu_custom_call.1} parent=5 // pred_region
        %s146 = ssub.s32 %s12, 1
        %p147 = pneg %p33
        %p148 = pneg %p30
        %p149 = pneg %p54
        %p150 = pneg %p51
        %s151 = smul.u32 2, %s17
        %p152 = scmp.lt.s32.totalorder %s151, 3
        %s153 = scalar_select %p152, %s151, 3
        %s154 = smul.addr %s153, 4
        %s155 = scalar_lea.vmem %s2, %s154
        %p156 = pneg %p80
        %p157 = pneg %p77
        %p158 = pneg %p106
        %p159 = pneg %p103
        %s160 = sand.u32 %s93, 1
        %s161 = scalar_lea.sflag [#allocation3], %s160
        %s162 = sand.u32 %s93, 1
        %s163 = smul.addr %s162, 8
        %s164 = scalar_lea.vmem [#allocation2], %s163
        %s165 = smul.u32 2, %s17
        %p166 = scmp.lt.s32.totalorder %s165, 3
        %s167 = scalar_select %p166, %s165, 3
        %s168 = smul.addr %s167, 4
        %s169 = scalar_lea.vmem %s2, %s168
        %s170 = smul.u32 2, %s17
        %s171 = smul.u32 2, %s17
        %v172 = vld [vmem:[%s0] sm:$0xff]
        %v173 = vld [vmem:[%s0 + $0x8] sm:$0x3]
        %v174 = vld [vmem:[%s169] sm:$0x77]
        %v176 = vcombine.high %v174, %v174
        %vm177 = vcmask 23552
        %v179 = vsel %vm177, %v172, 0
        %v182 = vsel %vm177, %v173, 0
        %vm184 = vcmask 1042432
        %v185 = vsel %vm184, %v174, 0
        %v187 = vsel %vm184, %v176, 0
        %189 = vmatprep.subr.mxu0 %v187
        %190 = vmatpush1.msra.mxu0 %v185
        %191 = vmatprep.subr.mxu0 0.0
        %192 = vmatpush1.msra.mxu0 0.0
        %193 = vmatprep.subr.mxu0 0.0
        %194 = vmatpush1.msra.mxu0 0.0
        %195 = vmatprep.subr.mxu0 0.0
        %196 = vmatpush1.msra.mxu0 0.0
        %197 = vmatprep.subr.mxu0 0.0
        %198 = vmatpush1.msra.mxu0 0.0
        %199 = vmatprep.subr.mxu0 0.0
        %200 = vmatpush1.msra.mxu0 0.0
        %201 = vmatprep.subr.mxu0 0.0
        %202 = vmatpush1.msra.mxu0 0.0
        %203 = vmatprep.subr.mxu0 0.0
        %204 = vmatpush1.msra.mxu0 0.0
        %205 = vmatprep.subr.mxu0 0.0
        %206 = vmatpush1.msra.mxu0 0.0
        %207 = vmatprep.subr.mxu0 0.0
        %208 = vmatpush1.msra.mxu0 0.0
        %209 = vmatprep.subr.mxu0 0.0
        %210 = vmatpush1.msra.mxu0 0.0
        %211 = vmatprep.subr.mxu0 0.0
        %212 = vmatpush1.msra.mxu0 0.0
        %213 = vmatprep.subr.mxu0 0.0
        %214 = vmatpush1.msra.mxu0 0.0
        %215 = vmatprep.subr.mxu0 0.0
        %216 = vmatpush1.msra.mxu0 0.0
        %217 = vmatprep.subr.mxu0 0.0
        %218 = vmatpush1.msra.mxu0 0.0
        %219 = vmatprep.subr.mxu0 0.0
        %220 = vmatpush1.msra.mxu0 0.0
        %221 = vmatprep.subr.mxu0 0.0
        %222 = vmatpush1.msra.mxu0 0.0
        %223 = vmatprep.subr.mxu0 0.0
        %224 = vmatpush1.msra.mxu0 0.0
        %225 = vmatprep.subr.mxu0 0.0
        %226 = vmatpush1.msra.mxu0 0.0
        %227 = vmatprep.subr.mxu0 0.0
        %228 = vmatpush1.msra.mxu0 0.0
        %229 = vmatprep.subr.mxu0 0.0
        %230 = vmatpush1.msra.mxu0 0.0
        %231 = vmatprep.subr.mxu0 0.0
        %232 = vmatpush1.msra.mxu0 0.0
        %233 = vmatprep.subr.mxu0 0.0
        %234 = vmatpush1.msra.mxu0 0.0
        %235 = vmatprep.subr.mxu0 0.0
        %236 = vmatpush1.msra.mxu0 0.0
        %237 = vmatprep.subr.mxu0 0.0
        %238 = vmatpush1.msra.mxu0 0.0
        %239 = vmatprep.subr.mxu0 0.0
        %240 = vmatpush1.msra.mxu0 0.0
        %241 = vmatprep.subr.mxu0 0.0
        %242 = vmatpush1.msra.mxu0 0.0
        %243 = vmatprep.subr.mxu0 0.0
        %244 = vmatpush1.msra.mxu0 0.0
        %245 = vmatprep.subr.mxu0 0.0
        %246 = vmatpush1.msra.mxu0 0.0
        %247 = vmatprep.subr.mxu0 0.0
        %248 = vmatpush1.msra.mxu0 0.0
        %249 = vmatprep.subr.mxu0 0.0
        %250 = vmatpush1.msra.mxu0 0.0
        %251 = vmatprep.subr.mxu0 0.0
        %252 = vmatpush1.msra.mxu0 0.0
        %253 = vmatprep.mubr.f32.mxu0 0.0
        %254 = vmatmul.mubr.f32.gmra.mrb[0].mxu0 %v179
        %v255 = vpop.f32.mrb[0].mxu0
        %v256 = vadd.f32 0.0, %v255
        %v257 = vpop.f32.mrb[0].mxu0
        %v258 = vadd.f32 0.0, %v257
        %259 = vmatprep.mubr.f32.mxu0 0.0
        %260 = vmatmul.mubr.f32.gmra.mrb[0].mxu0 %v182
        %v261 = vpop.f32.mrb[0].mxu0
        %v262 = vadd.f32 0.0, %v261
        %v263 = vpop.f32.mrb[0].mxu0
        %v264 = vadd.f32 0.0, %v263
        %265 = vdwg.mxu0
        %v266 = vmax.f32 %v256, 0.0
        %v267 = vmax.f32 %v258, 0.0
        %v268 = vmax.f32 %v262, 0.0
        %v269 = vmax.f32 %v264, 0.0
        %v270 = vld [vmem:[%s1] sm:$0x7]
        %vm271 = vcmask 80896
        %v273 = vsel %vm271, %v270, 0
        %vm275 = vcmask 1041408
        %v277 = vsel %vm275, %v268, 0
        %v280 = vsel %vm275, %v269, 0
        %282 = vmatprep.subr.mxu0 %v267
        %283 = vmatpush1.msra.mxu0 %v266
        %284 = vmatprep.subr.mxu0 %v280
        %285 = vmatpush1.msra.mxu0 %v277
        %286 = vmatprep.subr.mxu0 0.0
        %287 = vmatpush1.msra.mxu0 0.0
        %288 = vmatprep.subr.mxu0 0.0
        %289 = vmatpush1.msra.mxu0 0.0
        %290 = vmatprep.subr.mxu0 0.0
        %291 = vmatpush1.msra.mxu0 0.0
        %292 = vmatprep.subr.mxu0 0.0
        %293 = vmatpush1.msra.mxu0 0.0
        %294 = vmatprep.subr.mxu0 0.0
        %295 = vmatpush1.msra.mxu0 0.0
        %296 = vmatprep.subr.mxu0 0.0
        %297 = vmatpush1.msra.mxu0 0.0
        %298 = vmatprep.subr.mxu0 0.0
        %299 = vmatpush1.msra.mxu0 0.0
        %300 = vmatprep.subr.mxu0 0.0
        %301 = vmatpush1.msra.mxu0 0.0
        %302 = vmatprep.subr.mxu0 0.0
        %303 = vmatpush1.msra.mxu0 0.0
        %304 = vmatprep.subr.mxu0 0.0
        %305 = vmatpush1.msra.mxu0 0.0
        %306 = vmatprep.subr.mxu0 0.0
        %307 = vmatpush1.msra.mxu0 0.0
        %308 = vmatprep.subr.mxu0 0.0
        %309 = vmatpush1.msra.mxu0 0.0
        %310 = vmatprep.subr.mxu0 0.0
        %311 = vmatpush1.msra.mxu0 0.0
        %312 = vmatprep.subr.mxu0 0.0
        %313 = vmatpush1.msra.mxu0 0.0
        %314 = vmatprep.subr.mxu0 0.0
        %315 = vmatpush1.msra.mxu0 0.0
        %316 = vmatprep.subr.mxu0 0.0
        %317 = vmatpush1.msra.mxu0 0.0
        %318 = vmatprep.subr.mxu0 0.0
        %319 = vmatpush1.msra.mxu0 0.0
        %320 = vmatprep.subr.mxu0 0.0
        %321 = vmatpush1.msra.mxu0 0.0
        %322 = vmatprep.subr.mxu0 0.0
        %323 = vmatpush1.msra.mxu0 0.0
        %324 = vmatprep.subr.mxu0 0.0
        %325 = vmatpush1.msra.mxu0 0.0
        %326 = vmatprep.subr.mxu0 0.0
        %327 = vmatpush1.msra.mxu0 0.0
        %328 = vmatprep.subr.mxu0 0.0
        %329 = vmatpush1.msra.mxu0 0.0
        %330 = vmatprep.subr.mxu0 0.0
        %331 = vmatpush1.msra.mxu0 0.0
        %332 = vmatprep.subr.mxu0 0.0
        %333 = vmatpush1.msra.mxu0 0.0
        %334 = vmatprep.subr.mxu0 0.0
        %335 = vmatpush1.msra.mxu0 0.0
        %336 = vmatprep.subr.mxu0 0.0
        %337 = vmatpush1.msra.mxu0 0.0
        %338 = vmatprep.subr.mxu0 0.0
        %339 = vmatpush1.msra.mxu0 0.0
        %340 = vmatprep.subr.mxu0 0.0
        %341 = vmatpush1.msra.mxu0 0.0
        %342 = vmatprep.subr.mxu0 0.0
        %343 = vmatpush1.msra.mxu0 0.0
        %344 = vmatprep.subr.mxu0 0.0
        %345 = vmatpush1.msra.mxu0 0.0
        %346 = vmatprep.mubr.f32.mxu0 0.0
        %347 = vmatmul.mubr.f32.gmra.mrb[0].mxu0 %v273
        %v348 = vpop.f32.mrb[0].mxu0
        %v349 = vadd.f32 0.0, %v348
        %v350 = vpop.f32.mrb[0].mxu0
        %v351 = vadd.f32 0.0, %v350
        %352 = vdwg.mxu0
        %v355 = vcombine.low %v349, %v351
        %357 = vst [vmem:[%s164] sm:$0x77] %v355
        %s358 = sand.u32 %s93, 1
        %s359 = scalar_lea.sflag [#allocation3], %s358
        %s360 = sand.u32 %s93, 1
        %s361 = smul.addr %s360, 8
        %s362 = scalar_lea.vmem [#allocation2], %s361
        // Predicated region
        $region33: #{tpu_custom_call.1} parent=31 // pred_check
          %p363 = pneg %p103
        $region34: #{tpu_custom_call.1} parent=31 // pred_check_branch
          %365 = sbr.rel (%p363) target = $region36
        $region35: #{tpu_custom_call.1} parent=31 // pred_region
          %s366 = smul.u32 2, %s17
          %s368 = ssub.s32 128, 128
          %369 = vsyncadd %s359, %s368
          %s370 = smul.addr %s366, 64
          %s371 = scalar_lea.hbm %s3, %s370
          %s373 = sshll.u32 %s362, 4
          %s374 = int_to_ptr.vmem [resolvable:$true] %s373
          %376 = dma.vmem_to_hbm [thread:$0]  %s374, 128, %s371, %s359
        $region36: #{tpu_custom_call.1} parent=31 // pred_fallthru
          _
      $region32: #{tpu_custom_call.1} parent=5 // pred_fallthru
        _
      %p377 = scmp.le.s32.totalorder 2, %s12
      // Predicated region
      $region37: #{tpu_custom_call.1} parent=5 // pred_check
        %p378 = pneg %p377
      $region38: #{tpu_custom_call.1} parent=5 // pred_check_branch
        %380 = sbr.rel (%p378) target = $region40
      $region39: #{tpu_custom_call.1} parent=5 // pred_region
        %s381 = ssub.s32 %s12, 2
        // Predicated region
        $region41: #{tpu_custom_call.1} parent=39 // pred_check
          %p382 = pneg %p109
        $region42: #{tpu_custom_call.1} parent=39 // pred_check_branch
          %384 = sbr.rel (%p382) target = $region44
        $region43: #{tpu_custom_call.1} parent=39 // pred_region
          %s385 = sand.u32 %s94, 1
          %s386 = scalar_lea.sflag [#allocation3], %s385
          %s387 = sand.u32 %s94, 1
          %s388 = smul.addr %s387, 8
          %s389 = scalar_lea.vmem [#allocation2], %s388
          %390 = dma.done %s386, 128
        $region44: #{tpu_custom_call.1} parent=39 // pred_fallthru
          _
      $region40: #{tpu_custom_call.1} parent=5 // pred_fallthru
        _
    $region6: #{tpu_custom_call.1} parent=1 // loop_footer
      %s16 = sadd.s32 1, %s12
    $region7: #{tpu_custom_call.1} parent=1 // loop_footer_branch
      %11 = sbr.rel target = $region3
    $region8: #{tpu_custom_call.1} parent=1 // loop_exit
      _
    %391 = vsyncpa [#allocation3], 1
    %s392 = scalar_lea.sflag [#allocation3], 1
    %393 = vsyncpa %s392, 1

</llo_original>
